<compile_context>
chip_gen: v7x
topology: tpu7x:2x2x1
jax: 0.10.0
libtpu: 0.0.40
codegen_flags: <defaults>
</compile_context>

<pallas_src>
import functools
import math

import jax
import jax.numpy as jnp
from jax.experimental import pallas as pl
from jax.experimental.pallas import tpu as pltpu

LN_EPS = 1e-6  # the module uses partial(nn.LayerNorm, eps=1e-06)


def _round_up(x, m):
    return ((x + m - 1) // m) * m


@functools.lru_cache(maxsize=None)
def _vmem_limit_bytes():
    # Per-generation VMEM budget: ~85% of physical, capped at 100 MB.
    try:
        cap = pltpu.get_tpu_info().vmem_capacity_bytes
        return int(min(cap * 0.85, 100 * 1024 * 1024))
    except Exception:
        return 56 * 1024 * 1024  # safe on v5e/v6e (128 MiB) and v7x (64 MiB)


# ----------------------------- in-kernel helpers -----------------------------
def _layernorm(x, w, b, eps):
    mu = jnp.mean(x, axis=-1, keepdims=True)
    var = jnp.mean((x - mu) ** 2, axis=-1, keepdims=True)
    return (x - mu) * jax.lax.rsqrt(var + eps) * w + b


def _gelu(x):
    c = math.sqrt(2.0 / math.pi)
    return 0.5 * x * (1.0 + jnp.tanh(c * (x + 0.044715 * x * x * x)))


# ---------------------- patch embedding (conv-as-matmul) ---------------------
def patch_embed_kernel(p_ref, w_ref, b_ref, o_ref):
    o_ref[...] = (
        jnp.dot(p_ref[...], w_ref[...], preferred_element_type=jnp.float32)
        + b_ref[...]
    )


def patch_embed(x, conv_wmat_bf16, conv_b_f32, patch_size, *, row_tile=512):
    """x: (B, C, H, W) NCHW. conv_wmat_bf16: (K, D) with K = C*ps*ps."""
    B, C, H, W = x.shape
    ps = patch_size
    Hp, Wp = H // ps, W // ps
    K, D = conv_wmat_bf16.shape
    # glue: extract non-overlapping patches, flatten as (c, ph, pw) to match the
    # Conv2d weight layout (D, C, ps, ps).
    patches = x.reshape(B, C, Hp, ps, Wp, ps)
    patches = patches.transpose(0, 2, 4, 1, 3, 5).reshape(B * Hp * Wp, K)
    M = patches.shape[0]
    tm = row_tile if M >= row_tile else _round_up(M, 8)
    Mp = _round_up(M, tm)
    if Mp != M:
        patches = jnp.pad(patches, ((0, Mp - M), (0, 0)))
    patches = patches.astype(jnp.bfloat16)

    out = pl.pallas_call(
        patch_embed_kernel,
        grid=(Mp // tm,),
        in_specs=[
            pl.BlockSpec((tm, K), lambda i: (i, 0)),
            pl.BlockSpec((K, D), lambda i: (0, 0)),
            pl.BlockSpec((1, D), lambda i: (0, 0)),
        ],
        out_specs=pl.BlockSpec((tm, D), lambda i: (i, 0)),
        out_shape=jax.ShapeDtypeStruct((Mp, D), jnp.float32),
        compiler_params=pltpu.CompilerParams(
            dimension_semantics=("parallel",),
            vmem_limit_bytes=_vmem_limit_bytes()),
    )(patches, conv_wmat_bf16, conv_b_f32)
    return out[:M].reshape(B, Hp * Wp, D)


# ------------------- all transformer blocks in one pallas_call ---------------
# Packed per-layer vector rows (f32, width Wv):
#   0: ln1_w   1: ln1_b   2: qkv_b (q part pre-scaled)   3: proj_b
#   4: ln2_w   5: ln2_b   6: fc1_b                        7: fc2_b
def blocks_kernel(x_ref, vec_ref, qkvw_ref, projw_ref, fc1w_ref, fc2w_ref,
                  o_ref, *, num_heads, n_valid, eps):
    d = pl.program_id(1)

    # Layer 0: pull the embedded tokens into the resident residual stream.
    @pl.when(d == 0)
    def _():
        o_ref[...] = x_ref[...]

    x = o_ref[0]                            # (Np, D) f32, VMEM-resident residual
    Np, D = x.shape
    H = num_heads
    hd = D // H
    Dh = fc1w_ref.shape[2]

    vec = vec_ref[0]                        # (8, Wv) f32
    ln1_w, ln1_b = vec[0:1, 0:D], vec[1:2, 0:D]
    qkv_b = vec[2:3, 0:3 * D]
    proj_b = vec[3:4, 0:D]
    ln2_w, ln2_b = vec[4:5, 0:D], vec[5:6, 0:D]
    fc1_b = vec[6:7, 0:Dh]
    fc2_b = vec[7:8, 0:D]

    # ---- attention branch: x = x + proj(attn(LN1(x))) ----
    h = _layernorm(x, ln1_w, ln1_b, eps).astype(jnp.bfloat16)
    # Fused, lane-dense QKV projection; 1/sqrt(hd) is folded into q cols/bias.
    qkv = jnp.dot(h, qkvw_ref[0], preferred_element_type=jnp.float32) + qkv_b
    qkv = qkv.astype(jnp.bfloat16)          # (Np, 3D)

    if n_valid < Np:                        # static: mask padded keys
        key_ids = jax.lax.broadcasted_iota(jnp.int32, (1, Np), 1)
        key_mask = jnp.where(key_ids < n_valid,
                             jnp.float32(0.0), jnp.float32(-1e30))
    else:
        key_mask = None

    head_outs = []
    for hh in range(H):                     # static unroll over heads
        qh = qkv[:, hh * hd:(hh + 1) * hd]
        kh = qkv[:, D + hh * hd:D + (hh + 1) * hd]
        vh = qkv[:, 2 * D + hh * hd:2 * D + (hh + 1) * hd]
        s = jax.lax.dot_general(qh, kh, (((1,), (1,)), ((), ())),
                                preferred_element_type=jnp.float32)  # (Np, Np)
        if key_mask is not None:
            s = s + key_mask
        s = s - jnp.max(s, axis=-1, keepdims=True)
        p = jnp.exp(s)
        p = p * pl.reciprocal(jnp.sum(p, axis=-1, keepdims=True), approx=True)
        head_outs.append(jnp.dot(p.astype(jnp.bfloat16), vh,
                                 preferred_element_type=jnp.float32))  # (Np, hd)

    o = jnp.concatenate(head_outs, axis=-1).astype(jnp.bfloat16)       # (Np, D)
    attn = jnp.dot(o, projw_ref[0], preferred_element_type=jnp.float32) + proj_b
    x = x + attn

    # ---- MLP branch: x = x + fc2(gelu(fc1(LN2(x)))) ----
    h2 = _layernorm(x, ln2_w, ln2_b, eps).astype(jnp.bfloat16)
    h2 = jnp.dot(h2, fc1w_ref[0], preferred_element_type=jnp.float32) + fc1_b
    h2 = _gelu(h2)
    h2 = jnp.dot(h2.astype(jnp.bfloat16), fc2w_ref[0],
                 preferred_element_type=jnp.float32) + fc2_b
    o_ref[0] = x + h2


def run_blocks(x, p, *, num_heads, n_valid):
    B, Npad, D = x.shape
    depth = p["qkv_w"].shape[0]
    Dh = p["fc1_w"].shape[2]
    Wv = p["vecs"].shape[2]
    kernel = functools.partial(blocks_kernel, num_heads=num_heads,
                               n_valid=n_valid, eps=LN_EPS)
    return pl.pallas_call(
        kernel,
        grid=(B, depth),                      # depth innermost: weights prefetch
        in_specs=[
            pl.BlockSpec((1, Npad, D), lambda b, d: (b, 0, 0)),        # tokens
            pl.BlockSpec((1, 8, Wv), lambda b, d: (d, 0, 0)),          # packed vecs
            pl.BlockSpec((1, D, 3 * D), lambda b, d: (d, 0, 0)),       # qkv_w
            pl.BlockSpec((1, D, D), lambda b, d: (d, 0, 0)),           # proj_w
            pl.BlockSpec((1, D, Dh), lambda b, d: (d, 0, 0)),          # fc1_w
            pl.BlockSpec((1, Dh, D), lambda b, d: (d, 0, 0)),          # fc2_w
        ],
        out_specs=pl.BlockSpec((1, Npad, D), lambda b, d: (b, 0, 0)),  # resident
        out_shape=jax.ShapeDtypeStruct((B, Npad, D), jnp.float32),
        compiler_params=pltpu.CompilerParams(
            dimension_semantics=("parallel", "arbitrary"),
            vmem_limit_bytes=_vmem_limit_bytes()),
    )(x, p["vecs"], p["qkv_w"], p["proj_w"], p["fc1_w"], p["fc2_w"])


# --------------------------- final norm + head kernel ------------------------
def head_kernel(cls_ref, lnw_ref, lnb_ref, hw_ref, o_ref, *, eps):
    h = _layernorm(cls_ref[...], lnw_ref[...], lnb_ref[...], eps)
    o_ref[...] = jnp.dot(h.astype(jnp.bfloat16), hw_ref[...],
                         preferred_element_type=jnp.float32)


def run_head(cls, ln_w, ln_b, head_w_padded):
    B = cls.shape[0]
    c_pad = head_w_padded.shape[1]
    return pl.pallas_call(
        functools.partial(head_kernel, eps=LN_EPS),
        out_shape=jax.ShapeDtypeStruct((B, c_pad), jnp.float32),
    )(cls, ln_w, ln_b, head_w_padded)


# ------------------------------- parameter init ------------------------------
def init_params(key, *, in_chans, patch_size, embed_dim, depth, num_heads,
                mlp_ratio, num_classes, num_patches):
    del num_heads
    D = embed_dim
    Dh = int(D * mlp_ratio)
    K = in_chans * patch_size * patch_size

    def tn(k, shape, std=0.02):
        return (std * jax.random.truncated_normal(k, -2.0, 2.0, shape)).astype(jnp.float32)

    keys = iter(jax.random.split(key, 8 + 8 * depth))
    params = {
        "conv_w": tn(next(keys), (D, in_chans, patch_size, patch_size),
                     std=1.0 / math.sqrt(K)),
        "conv_b": tn(next(keys), (D,), std=1.0 / math.sqrt(K)),
        "cls_token": tn(next(keys), (1, 1, D)),
        "pos_embed": tn(next(keys), (1, num_patches + 1, D)),
        "norm_w": jnp.ones((1, D), jnp.float32),
        "norm_b": jnp.zeros((1, D), jnp.float32),
        "head_w": tn(next(keys), (D, num_classes)),     # head has bias=False
        "blocks": [],
    }
    for _ in range(depth):
        blk = {
            "ln1_w": jnp.ones((1, D), jnp.float32),
            "ln1_b": jnp.zeros((1, D), jnp.float32),
            "qkv_w": tn(next(keys), (D, 3 * D)),
            "qkv_b": tn(next(keys), (1, 3 * D)),        # qkv_bias=True
            "proj_w": tn(next(keys), (D, D)),
            "proj_b": tn(next(keys), (1, D)),
            "ln2_w": jnp.ones((1, D), jnp.float32),
            "ln2_b": jnp.zeros((1, D), jnp.float32),
            "fc1_w": tn(next(keys), (D, Dh)),
            "fc1_b": tn(next(keys), (1, Dh)),
            "fc2_w": tn(next(keys), (Dh, D)),
            "fc2_b": tn(next(keys), (1, D)),
        }
        params["blocks"].append(blk)
    return params


def prepare_params(raw, *, num_heads, num_classes):
    """Host-side weight prep: bf16 casts, depth stacking, scale folding, packing."""
    D = raw["conv_w"].shape[0]
    H = num_heads
    hd = D // H
    scale = 1.0 / math.sqrt(hd)                         # SDPA default scale
    K = raw["conv_w"].shape[1] * raw["conv_w"].shape[2] * raw["conv_w"].shape[3]
    Dh = raw["blocks"][0]["fc1_w"].shape[1]
    Wv = _round_up(max(3 * D, Dh), 128)

    prepared = {
        "conv_wmat": raw["conv_w"].reshape(D, K).T.astype(jnp.bfloat16),  # (K, D)
        "conv_b": raw["conv_b"].reshape(1, D).astype(jnp.float32),
        "cls_token": raw["cls_token"],
        "pos_embed": raw["pos_embed"],
        "norm_w": raw["norm_w"],
        "norm_b": raw["norm_b"],
        "num_classes": num_classes,
    }
    c_pad = _round_up(num_classes, 128)                 # lane-dense head output
    prepared["head_w"] = jnp.pad(
        raw["head_w"], ((0, 0), (0, c_pad - num_classes))).astype(jnp.bfloat16)

    def row(v):
        v = v.reshape(-1).astype(jnp.float32)
        return jnp.pad(v, (0, Wv - v.shape[0]))

    qkv_ws, proj_ws, fc1_ws, fc2_ws, vecs = [], [], [], [], []
    for b in raw["blocks"]:
        qkv_w = b["qkv_w"].at[:, :D].multiply(scale)    # fold scale into q cols
        qkv_b = b["qkv_b"].reshape(-1).at[:D].multiply(scale)
        qkv_ws.append(qkv_w.astype(jnp.bfloat16))
        proj_ws.append(b["proj_w"].astype(jnp.bfloat16))
        fc1_ws.append(b["fc1_w"].astype(jnp.bfloat16))
        fc2_ws.append(b["fc2_w"].astype(jnp.bfloat16))
        vecs.append(jnp.stack([
            row(b["ln1_w"]), row(b["ln1_b"]), row(qkv_b), row(b["proj_b"]),
            row(b["ln2_w"]), row(b["ln2_b"]), row(b["fc1_b"]), row(b["fc2_b"]),
        ]))
    prepared["qkv_w"] = jnp.stack(qkv_ws)               # (depth, D, 3D) bf16
    prepared["proj_w"] = jnp.stack(proj_ws)             # (depth, D, D)  bf16
    prepared["fc1_w"] = jnp.stack(fc1_ws)               # (depth, D, Dh) bf16
    prepared["fc2_w"] = jnp.stack(fc2_ws)               # (depth, Dh, D) bf16
    prepared["vecs"] = jnp.stack(vecs)                  # (depth, 8, Wv) f32
    return prepared


# ---------------------------------- forward ----------------------------------
def vit_forward(x, params, *, patch_size, num_heads):
    B = x.shape[0]
    emb = patch_embed(x, params["conv_wmat"], params["conv_b"], patch_size)  # (B,P,D)
    D = emb.shape[-1]
    cls = jnp.broadcast_to(params["cls_token"], (B, 1, D))
    h = jnp.concatenate([cls, emb], axis=1) + params["pos_embed"]  # pos_drop p=0
    N = h.shape[1]
    n_pad = _round_up(N, 128) if N >= 128 else _round_up(N, 8)
    if n_pad != N:
        h = jnp.pad(h, ((0, 0), (0, n_pad - N), (0, 0)))           # keys masked in-kernel
    h = run_blocks(h, params, num_heads=num_heads, n_valid=N)      # all layers, one call
    cls_tok = h[:, 0, :]                                           # glue: token 0 LN + head
    logits = run_head(cls_tok, params["norm_w"], params["norm_b"], params["head_w"])
    return logits[:, :params["num_classes"]]


if __name__ == "__main__":
    # Small synthetic config consistent with the module's constructor.
    B, C, IMG, PS = 2, 3, 16, 8
    EMBED, DEPTH, HEADS, MLP_RATIO, NUM_CLASSES = 32, 2, 4, 4.0, 10
    NUM_PATCHES = (IMG // PS) ** 2

    root = jax.random.PRNGKey(0)
    kx, kp = jax.random.split(root)
    x = jax.random.normal(kx, (B, C, IMG, IMG), dtype=jnp.float32)   # NCHW

    raw = init_params(
        kp, in_chans=C, patch_size=PS, embed_dim=EMBED, depth=DEPTH,
        num_heads=HEADS, mlp_ratio=MLP_RATIO, num_classes=NUM_CLASSES,
        num_patches=NUM_PATCHES)
    params = prepare_params(raw, num_heads=HEADS, num_classes=NUM_CLASSES)

    logits = vit_forward(x, params, patch_size=PS, num_heads=HEADS)
    jax.block_until_ready(logits)
    assert logits.shape == (B, NUM_CLASSES)
    assert bool(jnp.all(jnp.isfinite(logits)))
    print("KERNEL_OK")
</pallas_src>

<mosaic_0001>
module attributes {stable_mosaic.version = 11 : i64} {
  func.func @patch_embed_kernel(%arg0: i32, %arg1: memref<8x192xbf16, #tpu.memory_space<vmem>>, %arg2: memref<192x32xbf16, #tpu.memory_space<vmem>>, %arg3: memref<1x32xf32, #tpu.memory_space<vmem>>, %arg4: memref<8x32xf32, #tpu.memory_space<vmem>>) attributes {dimension_semantics = [#tpu.dimension_semantics<parallel>], iteration_bounds = array<i64: 1>, scalar_prefetch = 0 : i64, scratch_operands = 0 : i64, tpu.core_type = #tpu.core_type<tc>, window_params = [{transform_indices = @transform_0, window_bounds = array<i64: 8, 192>}, {pipeline_mode = #tpu.pipeline_mode<synchronous>, transform_indices = @transform_1, window_bounds = array<i64: 192, 32>}, {pipeline_mode = #tpu.pipeline_mode<synchronous>, transform_indices = @transform_2, window_bounds = array<i64: 1, 32>}, {transform_indices = @transform_3, window_bounds = array<i64: 8, 32>}]} {
    %c0 = arith.constant 0 : index
    %c0_0 = arith.constant 0 : index
    %0 = vector.load %arg1[%c0, %c0_0] : memref<8x192xbf16, #tpu.memory_space<vmem>>, vector<8x192xbf16>
    %c0_1 = arith.constant 0 : index
    %c0_2 = arith.constant 0 : index
    %1 = vector.load %arg2[%c0_1, %c0_2] : memref<192x32xbf16, #tpu.memory_space<vmem>>, vector<192x32xbf16>
    %cst = arith.constant dense<0.000000e+00> : vector<8x32xf32>
    %2 = tpu.matmul %0, %1, %cst {dimension_numbers = #tpu.dot_dimension_numbers<[1], [0], [0], [1], [0, 0, 1, 1], [], []>} : vector<8x192xbf16>, vector<192x32xbf16>, vector<8x32xf32> -> vector<8x32xf32>
    %c0_3 = arith.constant 0 : index
    %c0_4 = arith.constant 0 : index
    %3 = vector.load %arg3[%c0_3, %c0_4] : memref<1x32xf32, #tpu.memory_space<vmem>>, vector<1x32xf32>
    %4 = vector.broadcast %3 : vector<1x32xf32> to vector<8x32xf32>
    %5 = arith.addf %2, %4 : vector<8x32xf32>
    %c0_5 = arith.constant 0 : index
    %c0_6 = arith.constant 0 : index
    %6 = vector.load %arg4[%c0_5, %c0_6] : memref<8x32xf32, #tpu.memory_space<vmem>>, vector<8x32xf32>
    tpu.vector_store %arg4[%c0_5, %c0_6], %5 {strides = array<i32>} : memref<8x32xf32, #tpu.memory_space<vmem>>, vector<8x32xf32>,
    return
  }
  func.func @transform_0(%arg0: i32) -> (i32, i32) {
    %c0_i32 = arith.constant 0 : i32
    %c0_i32_0 = arith.constant 0 : i32
    return %arg0, %c0_i32 : i32, i32
  }
  func.func @transform_1(%arg0: i32) -> (i32, i32) {
    %c0_i32 = arith.constant 0 : i32
    %c0_i32_0 = arith.constant 0 : i32
    %c0_i32_1 = arith.constant 0 : i32
    return %c0_i32, %c0_i32_0 : i32, i32
  }
  func.func @transform_2(%arg0: i32) -> (i32, i32) {
    %c0_i32 = arith.constant 0 : i32
    %c0_i32_0 = arith.constant 0 : i32
    %c0_i32_1 = arith.constant 0 : i32
    return %c0_i32, %c0_i32_0 : i32, i32
  }
  func.func @transform_3(%arg0: i32) -> (i32, i32) {
    %c0_i32 = arith.constant 0 : i32
    %c0_i32_0 = arith.constant 0 : i32
    return %arg0, %c0_i32 : i32, i32
  }
}

</mosaic_0001>

<llo_original>
// kernel: tpu_custom_call.1
$region0: #{tpu_custom_call.1}
  #allocation0 [shape = 'u32[]', space=smem, size = 0x4, offset = 0x4, fixed_abs, tag = 'smem constant byte address 0x4 - core index']
  #allocation1 [shape = 'u32[144,128]{1,0:T(1,128)}', space=vmem, size = 0x12000, scoped, tag = 'internal scratch']
  %s0 = inlined_call_operand.vmem [shape: bf16[8,192], index: 0, kind: input, shape index: {}]
  %s1 = inlined_call_operand.vmem [shape: bf16[192,32], index: 1, kind: input, shape index: {}]
  %s2 = inlined_call_operand.vmem [shape: f32[1,32], index: 2, kind: input, shape index: {}]
  %s3 = inlined_call_operand.hbm [shape: f32[8,32], index: 3, kind: output, shape index: {}]
  %s4 = sld [smem:[#allocation0]]
  $region22: #{tpu_custom_call.1} parent=0
    _
  %s6 = ssub.s32 1, %s4
  %s7 = scalar_select 0, %s6, %s4
  $region1: #{tpu_custom_call.1} parent=0
    #allocation2 [shape = 'u8[4096]{0}', space=vmem, size = 0x1000, scoped, tag = 'output window, operand 0, single buffered']
    #allocation3 [shape = 's32[1]{0}', space=sflag, size = 0x4, scoped, tag = 'scoped memory for tpu_custom_call.1']
    %8 = vsyncpa [#allocation3], 0
    // Predicated region
    $region2: #{tpu_custom_call.1} parent=1 // pred_check
      _
    $region3: #{tpu_custom_call.1} parent=1 // pred_check_branch
      %10 = sbr.rel (0) target = $region5
    $region4: #{tpu_custom_call.1} parent=1 // pred_region
      _
    $region5: #{tpu_custom_call.1} parent=1 // pred_fallthru
      _
    // Predicated region
    $region6: #{tpu_custom_call.1} parent=1 // pred_check
      _
    $region7: #{tpu_custom_call.1} parent=1 // pred_check_branch
      %12 = sbr.rel (0) target = $region9
    $region8: #{tpu_custom_call.1} parent=1 // pred_region
      _
    $region9: #{tpu_custom_call.1} parent=1 // pred_fallthru
      _
    // Predicated region
    $region10: #{tpu_custom_call.1} parent=1 // pred_check
      _
    $region11: #{tpu_custom_call.1} parent=1 // pred_check_branch
      %14 = sbr.rel (0) target = $region13
    $region12: #{tpu_custom_call.1} parent=1 // pred_region
      _
    $region13: #{tpu_custom_call.1} parent=1 // pred_fallthru
      _
    %v16 = vld [vmem:[%s0] sm:$0xff]
    %v17 = vld [vmem:[%s1] sm:$0xf]
    %v18 = vld [vmem:[%s1 + $0x4] sm:$0xf]
    %v19 = vld [vmem:[%s1 + $0x8] sm:$0xf]
    %v20 = vld [vmem:[%s1 + $0xc] sm:$0xf]
    %v21 = vld [vmem:[%s1 + $0x10] sm:$0xf]
    %v22 = vld [vmem:[%s1 + $0x14] sm:$0xf]
    %v23 = vld [vmem:[%s1 + $0x18] sm:$0xf]
    %v24 = vld [vmem:[%s1 + $0x1c] sm:$0xf]
    %v25 = vld [vmem:[%s1 + $0x20] sm:$0xf]
    %v26 = vld [vmem:[%s1 + $0x24] sm:$0xf]
    %v27 = vld [vmem:[%s1 + $0x28] sm:$0xf]
    %v28 = vld [vmem:[%s1 + $0x2c] sm:$0xf]
    %v29 = vld [vmem:[%s1 + $0x30] sm:$0xf]
    %v30 = vld [vmem:[%s1 + $0x34] sm:$0xf]
    %v31 = vld [vmem:[%s1 + $0x38] sm:$0xf]
    %v32 = vld [vmem:[%s1 + $0x3c] sm:$0xf]
    %v33 = vld [vmem:[%s1 + $0x40] sm:$0xf]
    %v34 = vld [vmem:[%s1 + $0x44] sm:$0xf]
    %v35 = vld [vmem:[%s1 + $0x48] sm:$0xf]
    %v36 = vld [vmem:[%s1 + $0x4c] sm:$0xf]
    %v37 = vld [vmem:[%s1 + $0x50] sm:$0xf]
    %v38 = vld [vmem:[%s1 + $0x54] sm:$0xf]
    %v39 = vld [vmem:[%s1 + $0x58] sm:$0xf]
    %v40 = vld [vmem:[%s1 + $0x5c] sm:$0xf]
    %v41 = vld [vmem:[%s2] sm:$0x1]
    %v43 = vlaneseq
    %v44 = vshrl.u32 %v43, 7
    %v45 = vsub.s32 0, %v44
    %v46 = vrot.slane %v41, %v45
    %v49 = vunpack.c.l.b16 %v16
    %v50 = vunpack.c.h.b16 %v16
    %v51 = vpack.c.b16 %v49, %v49
    %v52 = vpack.c.b16 %v50, %v50
    %v78 = vunpack.c.l.b16 %v17
    %v79 = vunpack.c.l.b16 %v18
    %v80 = vunpack.c.l.b16 %v19
    %v81 = vunpack.c.l.b16 %v20
    %v82 = vunpack.c.l.b16 %v21
    %v83 = vunpack.c.l.b16 %v22
    %v84 = vunpack.c.l.b16 %v23
    %v85 = vunpack.c.l.b16 %v24
    %v86 = vunpack.c.l.b16 %v25
    %v87 = vunpack.c.l.b16 %v26
    %v88 = vunpack.c.l.b16 %v27
    %v89 = vunpack.c.l.b16 %v28
    %v90 = vunpack.c.l.b16 %v29
    %v91 = vunpack.c.l.b16 %v30
    %v92 = vunpack.c.l.b16 %v31
    %v93 = vunpack.c.l.b16 %v32
    %v94 = vunpack.c.l.b16 %v33
    %v95 = vunpack.c.l.b16 %v34
    %v96 = vunpack.c.l.b16 %v35
    %v97 = vunpack.c.l.b16 %v36
    %v98 = vunpack.c.l.b16 %v37
    %v99 = vunpack.c.l.b16 %v38
    %v100 = vunpack.c.l.b16 %v39
    %v101 = vunpack.c.l.b16 %v40
    %v102 = vpack.c.b16 %v79, %v78
    %v103 = vpack.c.b16 %v81, %v80
    %v104 = vpack.c.b16 %v83, %v82
    %v105 = vpack.c.b16 %v85, %v84
    %v106 = vpack.c.b16 %v87, %v86
    %v107 = vpack.c.b16 %v89, %v88
    %v108 = vpack.c.b16 %v91, %v90
    %v109 = vpack.c.b16 %v93, %v92
    %v110 = vpack.c.b16 %v95, %v94
    %v111 = vpack.c.b16 %v97, %v96
    %v112 = vpack.c.b16 %v99, %v98
    %v113 = vpack.c.b16 %v101, %v100
    %vm126 = vcmask 523264
    %v128 = vsel %vm126, %v52, 0
    %130 = vmatprep.subr.bf16.mxu0 0
    %131 = vmatpush1.bf16.msra.mxu0 %v102
    %132 = vmatprep.subr.bf16.mxu0 0
    %133 = vmatpush1.bf16.msra.mxu0 %v103
    %134 = vmatprep.subr.bf16.mxu0 0
    %135 = vmatpush1.bf16.msra.mxu0 %v104
    %136 = vmatprep.subr.bf16.mxu0 0
    %137 = vmatpush1.bf16.msra.mxu0 %v105
    %138 = vmatprep.subr.bf16.mxu0 0
    %139 = vmatpush1.bf16.msra.mxu0 %v106
    %140 = vmatprep.subr.bf16.mxu0 0
    %141 = vmatpush1.bf16.msra.mxu0 %v107
    %142 = vmatprep.subr.bf16.mxu0 0
    %143 = vmatpush1.bf16.msra.mxu0 %v108
    %144 = vmatprep.subr.bf16.mxu0 0
    %145 = vmatpush1.bf16.msra.mxu0 %v109
    %146 = vmatprep.subr.bf16.mxu0 0
    %147 = vmatpush1.bf16.msra.mxu0 %v110
    %148 = vmatprep.subr.bf16.mxu0 0
    %149 = vmatpush1.bf16.msra.mxu0 %v111
    %150 = vmatprep.subr.bf16.mxu0 0
    %151 = vmatpush1.bf16.msra.mxu0 %v112
    %152 = vmatprep.subr.bf16.mxu0 0
    %153 = vmatpush1.bf16.msra.mxu0 %v113
    %154 = vmatprep.subr.bf16.mxu0 0
    %155 = vmatpush1.bf16.msra.mxu0 0
    %156 = vmatprep.subr.bf16.mxu0 0
    %157 = vmatpush1.bf16.msra.mxu0 0
    %158 = vmatprep.subr.bf16.mxu0 0
    %159 = vmatpush1.bf16.msra.mxu0 0
    %160 = vmatprep.subr.bf16.mxu0 0
    %161 = vmatpush1.bf16.msra.mxu0 0
    %162 = vmatprep.mubr.bf16.mxu0 %v128
    %163 = vmatmul.mubr.bf16.gmra.mrb[0].mxu0 %v51
    %v164 = vpop.f32.mrb[0].mxu0
    %v165 = vadd.f32 %v46, %v164
    %v166 = vpop.f32.mrb[0].mxu0
    %v167 = vpop.f32.mrb[0].mxu0
    %v168 = vpop.f32.mrb[0].mxu0
    %169 = vdwg.mxu0
    %vm170 = vcmask 261120
    %171 = vst.msk [vmem:[#allocation2] sm:$0xff] %vm170, %v165
    // Predicated region
    $region14: #{tpu_custom_call.1} parent=1 // pred_check
      _
    $region15: #{tpu_custom_call.1} parent=1 // pred_check_branch
      %173 = sbr.rel (0) target = $region17
    $region16: #{tpu_custom_call.1} parent=1 // pred_region
      %s175 = ssub.s32 128, 128
      %176 = vsyncadd [#allocation3], %s175
      %s178 = sshll.u32 [#allocation2], 4
      %s179 = int_to_ptr.vmem [resolvable:$true] %s178
      %181 = dma.vmem_to_hbm [thread:$0]  %s179, 128, %s3, [#allocation3]
    $region17: #{tpu_custom_call.1} parent=1 // pred_fallthru
      _
    // Predicated region
    $region18: #{tpu_custom_call.1} parent=1 // pred_check
      _
    $region19: #{tpu_custom_call.1} parent=1 // pred_check_branch
      %183 = sbr.rel (0) target = $region21
    $region20: #{tpu_custom_call.1} parent=1 // pred_region
      %184 = dma.done [#allocation3], 128
    $region21: #{tpu_custom_call.1} parent=1 // pred_fallthru
      _
    %185 = vsyncpa [#allocation3], 1

</llo_original>
